<compile_context>
chip_gen: v6e
topology: v6e:2x2x1
jax: 0.10.0
libtpu: 0.0.40
codegen_flags: <defaults>
</compile_context>

<pallas_src>
import functools

import jax
import jax.numpy as jnp
from jax.experimental import pallas as pl
from jax.experimental.pallas import tpu as pltpu

_LANE = 128


def _pixel_attention_kernel(w1_ref, b1_ref, w2_ref, b2_ref, x_ref, o_ref):
    """One (batch, row-tile) block.

    w1_ref : SMEM (Cr*C,)  first 1x1 conv weight, row-major flatten of (Cr, C)
    b1_ref : SMEM (Cr,)    first 1x1 conv bias
    w2_ref : SMEM (Cr,)    second 1x1 conv weight (flattened from (1, Cr))
    b2_ref : SMEM (1,)     second 1x1 conv bias
    x_ref  : VMEM (1, C, R, 128) input pixels, lane-dense spatial layout
    o_ref  : VMEM (1, C, R, 128) output pixels
    """
    xf = x_ref[...].astype(jnp.float32)            # (1, C, R, 128)
    C = xf.shape[1]
    Cr = b1_ref.shape[0]

    # Per-pixel MLP (C -> Cr -> 1) as unrolled VPU FMAs on full (R, 128) vregs
    # with scalar weights/biases held in SMEM.
    # TODO(synk): for large C (>=128) switch to a jnp.dot/MXU path on a
    # (pixels, C) presentation instead of this scalar unroll.
    pre = None
    for r in range(Cr):
        h = xf[:, 0] * w1_ref[r * C] + b1_ref[r]   # (1, R, 128)
        for c in range(1, C):
            h = h + xf[:, c] * w1_ref[r * C + c]
        h = jnp.maximum(h, 0.0)                    # ReLU
        term = h * w2_ref[r]
        pre = term if pre is None else pre + term
    att = jax.nn.sigmoid(pre + b2_ref[0])          # (1, R, 128), EUP

    # Pixel attention: broadcast the per-pixel scalar over channels.
    o_ref[...] = (xf * att[:, None]).astype(o_ref.dtype)


@functools.partial(jax.jit, static_argnames=("max_block_bytes",))
def pixel_attention(x_nchw, w1, b1, w2, b2, *, max_block_bytes=4 * 1024 * 1024):
    """x_nchw: [B, C, H, W]; w1: [Cr, C]; b1: [Cr]; w2: [1, Cr]; b2: [1]."""
    B, C, H, W = x_nchw.shape
    HW = H * W

    # Lane-dense layout: (B, C, n_rows, 128).  Free reshape when H*W is a
    # multiple of 128; otherwise pad the spatial tail once (padded lanes yield
    # 0 * sigmoid(...) = 0 and are sliced off).
    # TODO(synk): a fully pad-free ragged path would keep a 3D layout and rely
    # on Pallas partial-block masking along the lane axis.
    hw_pad = -(-HW // _LANE) * _LANE
    x3d = x_nchw.reshape(B, C, HW)
    if hw_pad != HW:
        x3d = jnp.pad(x3d, ((0, 0), (0, 0), (0, hw_pad - HW)))
    n_rows = hw_pad // _LANE
    x4d = x3d.reshape(B, C, n_rows, _LANE)

    # Row-tile selection: ~max_block_bytes of input per grid step (amortizes
    # the ~0.35 us per-step overhead), second-minor dim a multiple of 8 (or the
    # full extent), and >=2 grid steps when B == 1 so both v7x TensorCores work.
    itemsize = jnp.dtype(x_nchw.dtype).itemsize
    bytes_per_row = C * _LANE * itemsize
    rows_budget = max(8, max_block_bytes // bytes_per_row)
    rows_tile = min(n_rows, rows_budget)
    if B == 1 and n_rows >= 16:
        half = -(-((n_rows + 1) // 2) // 8) * 8
        rows_tile = min(rows_tile, half)
    if rows_tile != n_rows:
        rows_tile = max(8, (rows_tile // 8) * 8)
    n_row_tiles = -(-n_rows // rows_tile)  # partial last block masked by Pallas

    smem = pl.BlockSpec(memory_space=pltpu.MemorySpace.SMEM)

    out4d = pl.pallas_call(
        _pixel_attention_kernel,
        out_shape=jax.ShapeDtypeStruct((B, C, n_rows, _LANE), x_nchw.dtype),
        grid=(B, n_row_tiles),
        in_specs=[
            smem,                                                   # w1 (flat)
            smem,                                                   # b1
            smem,                                                   # w2 (flat)
            smem,                                                   # b2
            pl.BlockSpec((1, C, rows_tile, _LANE),
                         lambda b, t: (b, 0, t, 0)),                # x
        ],
        out_specs=pl.BlockSpec((1, C, rows_tile, _LANE),
                               lambda b, t: (b, 0, t, 0)),
        compiler_params=pltpu.CompilerParams(
            dimension_semantics=("parallel", "parallel"),
            vmem_limit_bytes=32 * 1024 * 1024,
        ),
    )(
        w1.reshape(-1).astype(jnp.float32),
        b1.astype(jnp.float32),
        w2.reshape(-1).astype(jnp.float32),
        b2.astype(jnp.float32),
        x4d,
    )

    out3d = out4d.reshape(B, C, hw_pad)
    if hw_pad != HW:
        out3d = out3d[:, :, :HW]
    return out3d.reshape(B, C, H, W)


def _reference(x, w1, b1, w2, b2):
    """Plain-JAX reference of the PyTorch forward (kernel_size=1)."""
    xf = x.astype(jnp.float32)
    h = jnp.einsum("bchw,oc->bohw", xf, w1) + b1[None, :, None, None]
    h = jnp.maximum(h, 0.0)
    a = jnp.einsum("bchw,oc->bohw", h, w2) + b2[None, :, None, None]
    return (xf * jax.nn.sigmoid(a)).astype(x.dtype)


if __name__ == "__main__":
    B, C, H, W = 2, 4, 16, 16
    reduction_ratio = 2
    Cr = C // reduction_ratio

    key = jax.random.PRNGKey(0)
    kx, k1, k2, k3, k4 = jax.random.split(key, 5)

    x = jax.random.normal(kx, (B, C, H, W), dtype=jnp.float32)
    # Parameter shapes match nn.Conv2d with kernel_size=1 (squeezed).
    w1 = jax.random.normal(k1, (Cr, C), dtype=jnp.float32) * 0.5   # fc[0].weight
    b1 = jax.random.normal(k2, (Cr,), dtype=jnp.float32) * 0.1     # fc[0].bias
    w2 = jax.random.normal(k3, (1, Cr), dtype=jnp.float32) * 0.5   # fc[2].weight
    b2 = jax.random.normal(k4, (1,), dtype=jnp.float32) * 0.1      # fc[2].bias

    out = pixel_attention(x, w1, b1, w2, b2)
    out = jax.block_until_ready(out)

    ref = _reference(x, w1, b1, w2, b2)
    assert out.shape == (B, C, H, W)
    assert jnp.allclose(out, ref, atol=1e-5, rtol=1e-5), "mismatch vs reference"

    print("KERNEL_OK")
</pallas_src>

<mosaic_0001>
module attributes {stable_mosaic.version = 11 : i64} {
  func.func @_pixel_attention_kernel(%arg0: i32, %arg1: i32, %arg2: memref<8xf32, #tpu.memory_space<smem>>, %arg3: memref<2xf32, #tpu.memory_space<smem>>, %arg4: memref<2xf32, #tpu.memory_space<smem>>, %arg5: memref<1xf32, #tpu.memory_space<smem>>, %arg6: memref<1x4x2x128xf32, #tpu.memory_space<vmem>>, %arg7: memref<1x4x2x128xf32, #tpu.memory_space<vmem>>) attributes {dimension_semantics = [#tpu.dimension_semantics<parallel>, #tpu.dimension_semantics<parallel>], iteration_bounds = array<i64: 2, 1>, scalar_prefetch = 0 : i64, scratch_operands = 0 : i64, tpu.core_type = #tpu.core_type<tc>, window_params = [{transform_indices = @transform_0, window_bounds = array<i64: 8>}, {transform_indices = @transform_1, window_bounds = array<i64: 2>}, {transform_indices = @transform_2, window_bounds = array<i64: 2>}, {transform_indices = @transform_3, window_bounds = array<i64: 1>}, {transform_indices = @transform_4, window_bounds = array<i64: 1, 4, 2, 128>}, {transform_indices = @transform_5, window_bounds = array<i64: 1, 4, 2, 128>}]} {
    %c0 = arith.constant 0 : index
    %c0_0 = arith.constant 0 : index
    %c0_1 = arith.constant 0 : index
    %c0_2 = arith.constant 0 : index
    %0 = vector.load %arg6[%c0, %c0_0, %c0_1, %c0_2] : memref<1x4x2x128xf32, #tpu.memory_space<vmem>>, vector<1x4x2x128xf32>
    %1 = vector.extract_strided_slice %0 {offsets = [0, 0, 0, 0], sizes = [1, 1, 2, 128], strides = [1, 1, 1, 1]} : vector<1x4x2x128xf32> to vector<1x1x2x128xf32>
    %2 = vector.shape_cast %1 : vector<1x1x2x128xf32> to vector<1x2x128xf32>
    %c0_3 = arith.constant 0 : index
    %3 = memref.load %arg2[%c0_3] : memref<8xf32, #tpu.memory_space<smem>>
    %4 = vector.broadcast %3 : f32 to vector<1x2x128xf32>
    %5 = arith.mulf %2, %4 : vector<1x2x128xf32>
    %c0_4 = arith.constant 0 : index
    %6 = memref.load %arg3[%c0_4] : memref<2xf32, #tpu.memory_space<smem>>
    %7 = vector.broadcast %6 : f32 to vector<1x2x128xf32>
    %8 = arith.addf %5, %7 : vector<1x2x128xf32>
    %9 = vector.extract_strided_slice %0 {offsets = [0, 1, 0, 0], sizes = [1, 1, 2, 128], strides = [1, 1, 1, 1]} : vector<1x4x2x128xf32> to vector<1x1x2x128xf32>
    %10 = vector.shape_cast %9 : vector<1x1x2x128xf32> to vector<1x2x128xf32>
    %c1 = arith.constant 1 : index
    %11 = memref.load %arg2[%c1] : memref<8xf32, #tpu.memory_space<smem>>
    %12 = vector.broadcast %11 : f32 to vector<1x2x128xf32>
    %13 = arith.mulf %10, %12 : vector<1x2x128xf32>
    %14 = arith.addf %8, %13 : vector<1x2x128xf32>
    %15 = vector.extract_strided_slice %0 {offsets = [0, 2, 0, 0], sizes = [1, 1, 2, 128], strides = [1, 1, 1, 1]} : vector<1x4x2x128xf32> to vector<1x1x2x128xf32>
    %16 = vector.shape_cast %15 : vector<1x1x2x128xf32> to vector<1x2x128xf32>
    %c2 = arith.constant 2 : index
    %17 = memref.load %arg2[%c2] : memref<8xf32, #tpu.memory_space<smem>>
    %18 = vector.broadcast %17 : f32 to vector<1x2x128xf32>
    %19 = arith.mulf %16, %18 : vector<1x2x128xf32>
    %20 = arith.addf %14, %19 : vector<1x2x128xf32>
    %21 = vector.extract_strided_slice %0 {offsets = [0, 3, 0, 0], sizes = [1, 1, 2, 128], strides = [1, 1, 1, 1]} : vector<1x4x2x128xf32> to vector<1x1x2x128xf32>
    %22 = vector.shape_cast %21 : vector<1x1x2x128xf32> to vector<1x2x128xf32>
    %c3 = arith.constant 3 : index
    %23 = memref.load %arg2[%c3] : memref<8xf32, #tpu.memory_space<smem>>
    %24 = vector.broadcast %23 : f32 to vector<1x2x128xf32>
    %25 = arith.mulf %22, %24 : vector<1x2x128xf32>
    %26 = arith.addf %20, %25 : vector<1x2x128xf32>
    %cst = arith.constant 0.000000e+00 : f32
    %27 = vector.broadcast %cst : f32 to vector<1x2x128xf32>
    %28 = arith.maximumf %26, %27 : vector<1x2x128xf32>
    %c0_5 = arith.constant 0 : index
    %29 = memref.load %arg4[%c0_5] : memref<2xf32, #tpu.memory_space<smem>>
    %30 = vector.broadcast %29 : f32 to vector<1x2x128xf32>
    %31 = arith.mulf %28, %30 : vector<1x2x128xf32>
    %32 = vector.extract_strided_slice %0 {offsets = [0, 0, 0, 0], sizes = [1, 1, 2, 128], strides = [1, 1, 1, 1]} : vector<1x4x2x128xf32> to vector<1x1x2x128xf32>
    %33 = vector.shape_cast %32 : vector<1x1x2x128xf32> to vector<1x2x128xf32>
    %c4 = arith.constant 4 : index
    %34 = memref.load %arg2[%c4] : memref<8xf32, #tpu.memory_space<smem>>
    %35 = vector.broadcast %34 : f32 to vector<1x2x128xf32>
    %36 = arith.mulf %33, %35 : vector<1x2x128xf32>
    %c1_6 = arith.constant 1 : index
    %37 = memref.load %arg3[%c1_6] : memref<2xf32, #tpu.memory_space<smem>>
    %38 = vector.broadcast %37 : f32 to vector<1x2x128xf32>
    %39 = arith.addf %36, %38 : vector<1x2x128xf32>
    %40 = vector.extract_strided_slice %0 {offsets = [0, 1, 0, 0], sizes = [1, 1, 2, 128], strides = [1, 1, 1, 1]} : vector<1x4x2x128xf32> to vector<1x1x2x128xf32>
    %41 = vector.shape_cast %40 : vector<1x1x2x128xf32> to vector<1x2x128xf32>
    %c5 = arith.constant 5 : index
    %42 = memref.load %arg2[%c5] : memref<8xf32, #tpu.memory_space<smem>>
    %43 = vector.broadcast %42 : f32 to vector<1x2x128xf32>
    %44 = arith.mulf %41, %43 : vector<1x2x128xf32>
    %45 = arith.addf %39, %44 : vector<1x2x128xf32>
    %46 = vector.extract_strided_slice %0 {offsets = [0, 2, 0, 0], sizes = [1, 1, 2, 128], strides = [1, 1, 1, 1]} : vector<1x4x2x128xf32> to vector<1x1x2x128xf32>
    %47 = vector.shape_cast %46 : vector<1x1x2x128xf32> to vector<1x2x128xf32>
    %c6 = arith.constant 6 : index
    %48 = memref.load %arg2[%c6] : memref<8xf32, #tpu.memory_space<smem>>
    %49 = vector.broadcast %48 : f32 to vector<1x2x128xf32>
    %50 = arith.mulf %47, %49 : vector<1x2x128xf32>
    %51 = arith.addf %45, %50 : vector<1x2x128xf32>
    %52 = vector.extract_strided_slice %0 {offsets = [0, 3, 0, 0], sizes = [1, 1, 2, 128], strides = [1, 1, 1, 1]} : vector<1x4x2x128xf32> to vector<1x1x2x128xf32>
    %53 = vector.shape_cast %52 : vector<1x1x2x128xf32> to vector<1x2x128xf32>
    %c7 = arith.constant 7 : index
    %54 = memref.load %arg2[%c7] : memref<8xf32, #tpu.memory_space<smem>>
    %55 = vector.broadcast %54 : f32 to vector<1x2x128xf32>
    %56 = arith.mulf %53, %55 : vector<1x2x128xf32>
    %57 = arith.addf %51, %56 : vector<1x2x128xf32>
    %cst_7 = arith.constant 0.000000e+00 : f32
    %58 = vector.broadcast %cst_7 : f32 to vector<1x2x128xf32>
    %59 = arith.maximumf %57, %58 : vector<1x2x128xf32>
    %c1_8 = arith.constant 1 : index
    %60 = memref.load %arg4[%c1_8] : memref<2xf32, #tpu.memory_space<smem>>
    %61 = vector.broadcast %60 : f32 to vector<1x2x128xf32>
    %62 = arith.mulf %59, %61 : vector<1x2x128xf32>
    %63 = arith.addf %31, %62 : vector<1x2x128xf32>
    %c0_9 = arith.constant 0 : index
    %64 = memref.load %arg5[%c0_9] : memref<1xf32, #tpu.memory_space<smem>>
    %65 = vector.broadcast %64 : f32 to vector<1x2x128xf32>
    %66 = arith.addf %63, %65 : vector<1x2x128xf32>
    %67 = arith.negf %66 : vector<1x2x128xf32>
    %68 = math.exp %67 : vector<1x2x128xf32>
    %cst_10 = arith.constant 1.000000e+00 : f32
    %69 = vector.broadcast %cst_10 : f32 to vector<1x2x128xf32>
    %70 = arith.addf %69, %68 : vector<1x2x128xf32>
    %71 = arith.divf %69, %70 : vector<1x2x128xf32>
    %72 = vector.shape_cast %71 : vector<1x2x128xf32> to vector<1x1x2x128xf32>
    %73 = vector.broadcast %72 : vector<1x1x2x128xf32> to vector<1x4x2x128xf32>
    %74 = arith.mulf %0, %73 : vector<1x4x2x128xf32>
    %c0_11 = arith.constant 0 : index
    %c0_12 = arith.constant 0 : index
    %c0_13 = arith.constant 0 : index
    %c0_14 = arith.constant 0 : index
    %75 = vector.load %arg7[%c0_11, %c0_12, %c0_13, %c0_14] : memref<1x4x2x128xf32, #tpu.memory_space<vmem>>, vector<1x4x2x128xf32>
    tpu.vector_store %arg7[%c0_11, %c0_12, %c0_13, %c0_14], %74 {strides = array<i32>} : memref<1x4x2x128xf32, #tpu.memory_space<vmem>>, vector<1x4x2x128xf32>,
    return
  }
  func.func @transform_0(%arg0: i32, %arg1: i32) -> i32 {
    %c0_i32 = arith.constant 0 : i32
    %c0_i32_0 = arith.constant 0 : i32
    return %c0_i32 : i32
  }
  func.func @transform_1(%arg0: i32, %arg1: i32) -> i32 {
    %c0_i32 = arith.constant 0 : i32
    %c0_i32_0 = arith.constant 0 : i32
    return %c0_i32 : i32
  }
  func.func @transform_2(%arg0: i32, %arg1: i32) -> i32 {
    %c0_i32 = arith.constant 0 : i32
    %c0_i32_0 = arith.constant 0 : i32
    return %c0_i32 : i32
  }
  func.func @transform_3(%arg0: i32, %arg1: i32) -> i32 {
    %c0_i32 = arith.constant 0 : i32
    %c0_i32_0 = arith.constant 0 : i32
    return %c0_i32 : i32
  }
  func.func @transform_4(%arg0: i32, %arg1: i32) -> (i32, i32, i32, i32) {
    %c0_i32 = arith.constant 0 : i32
    %c0_i32_0 = arith.constant 0 : i32
    %c0_i32_1 = arith.constant 0 : i32
    return %arg0, %c0_i32, %arg1, %c0_i32_0 : i32, i32, i32, i32
  }
  func.func @transform_5(%arg0: i32, %arg1: i32) -> (i32, i32, i32, i32) {
    %c0_i32 = arith.constant 0 : i32
    %c0_i32_0 = arith.constant 0 : i32
    %c0_i32_1 = arith.constant 0 : i32
    return %arg0, %c0_i32, %arg1, %c0_i32_0 : i32, i32, i32, i32
  }
}

</mosaic_0001>

<llo_original>
// kernel: pixel_attention.1
$region0: #{pixel_attention.1}
  #allocation0 [shape = 'u32[]', space=smem, size = 0x4, offset = 0x4, fixed_abs, tag = 'smem constant byte address 0x4 - core index']
  #allocation1 [shape = 'u32[144,128]{1,0:T(1,128)}', space=vmem, size = 0x12000, scoped, tag = 'internal scratch']
  #allocation2 [shape = 'f32[1]{0:T(128)S(6)}', space=smem, size = 0x200, scoped, tag = 'scoped memory for pixel_attention.1']
  %s0 = inlined_call_operand.vmem [shape: f32[8], index: 0, kind: input, shape index: {}]
  %s1 = inlined_call_operand.vmem [shape: f32[2], index: 1, kind: input, shape index: {}]
  %s2 = inlined_call_operand.vmem [shape: f32[2], index: 2, kind: input, shape index: {}]
  %s3 = inlined_call_operand.<no memory space> [shape: f32[1], index: 3, kind: input, shape index: {}]
  %s4 = inlined_call_operand.vmem [shape: f32[2,4,2,128], index: 4, kind: input, shape index: {}]
  %s5 = inlined_call_operand.vmem [shape: f32[2,4,2,128], index: 5, kind: output, shape index: {}]
  %s6 = sld [smem:[#allocation0]]
  $region65: #{pixel_attention.1} parent=0
    _
  %s8 = ssub.s32 1, %s6
  %s9 = scalar_select 0, %s8, %s6
  %10 = sst [smem:[#allocation2]] %s3
  $region1: #{pixel_attention.1} parent=0
    #allocation3 [shape = 'u8[512]{0}', space=smem, size = 0x200, scoped, tag = 'input window, operand 0, single buffered']
    #allocation4 [shape = 's32[2]{0}', space=sflag, size = 0x8, scoped, tag = 'scoped memory for pixel_attention.1']
    #allocation5 [shape = 'u8[512]{0}', space=smem, size = 0x200, scoped, tag = 'input window, operand 1, single buffered']
    #allocation6 [shape = 's32[1]{0}', space=sflag, size = 0x4, scoped, tag = 'scoped memory for pixel_attention.1']
    #allocation7 [shape = 'u8[512]{0}', space=smem, size = 0x200, scoped, tag = 'input window, operand 2, single buffered']
    %11 = vsyncpa [#allocation4], 0
    %12 = vsyncpa [#allocation6], 0
    loop: start=0, step=1, limit=4
    $region2: #{pixel_attention.1} parent=1 // loop_pre_header
      _
    $region3: #{pixel_attention.1} parent=1 // loop_header
      %s14 = sphi 0, %s18
      %p15 = scmp.ge.s32.totalorder %s14, 4
      %s21 = sphi 0, %s33
      %s22 = sphi 0, %s29
      %s23 = sphi 0, %s21
      %s24 = sphi 0, %s22
      %s25 = sphi 0, %s23
      %s26 = sphi 0, %s24
      %s34 = sphi 0, %s34
      %s36 = sphi 0, %s34
      %s37 = sphi 0, %s36
      %s51 = sphi 0, %s37
      %s55 = sphi 0, %s55
      %s57 = sphi 0, %s55
      %s58 = sphi 0, %s57
      %s72 = sphi 0, %s58
      %s76 = sphi 0, %s76
      %s78 = sphi 0, %s76
      %s79 = sphi 0, %s78
      %s93 = sphi 0, %s79
      %s97 = sphi 0, %s97
      %s99 = sphi 0, %s97
      %s100 = sphi 0, %s99
      %s114 = sphi 0, %s100
      %s122 = sphi 0, %s124
      %s125 = sphi 0, %s122
      %s126 = sphi 0, %s125
      %s142 = sphi 0, %s126
      %s150 = sphi 0, %s152
      %s153 = sphi 0, %s150
      %s154 = sphi 0, %s153
      %s170 = sphi 0, %s154
    $region4: #{pixel_attention.1} parent=1 // loop_header_branch
      %17 = sbr.rel (%p15) target = $region8
    $region5: #{pixel_attention.1} parent=1 // loop_body
      %s19 = ssub.s32 %s14, 1
      %s20 = ssub.s32 %s14, 2
      %s27 = sadd.s32 1, %s22
      %p28 = scmp.ge.s32.totalorder %s27, 1
      %s29 = scalar_select %p28, 0, %s27
      %s30 = sadd.s32 1, %s21
      %s31 = scalar_select %p28, %s30, %s21
      %p32 = scmp.ge.s32.totalorder %s31, 2
      %s33 = scalar_select %p32, 0, %s31
      %s35 = sadd.s32 %s34, 1
      %p38 = scmp.eq.s32.totalorder %s14, 1
      %p39 = scmp.ne.s32.totalorder %s34, %s36
      %p40 = scmp.eq.s32.totalorder %s14, 0
      %p41 = por %p39, %p40
      %p42 = scmp.ne.s32.totalorder %s34, %s36
      %p43 = scmp.eq.s32.totalorder %s19, 1
      %p44 = por %p42, %p43
      %p45 = scmp.ne.s32.totalorder %s36, %s37
      %p46 = scmp.eq.s32.totalorder %s19, 0
      %p47 = por %p45, %p46
      %p48 = scmp.ne.s32.totalorder %s36, %s37
      %p49 = scmp.eq.s32.totalorder %s20, 1
      %p50 = por %p48, %p49
      %p52 = scmp.ne.s32.totalorder %s37, %s51
      %p53 = scmp.eq.s32.totalorder %s20, 0
      %p54 = por %p52, %p53
      %s56 = sadd.s32 %s55, 1
      %p59 = scmp.eq.s32.totalorder %s14, 1
      %p60 = scmp.ne.s32.totalorder %s55, %s57
      %p61 = scmp.eq.s32.totalorder %s14, 0
      %p62 = por %p60, %p61
      %p63 = scmp.ne.s32.totalorder %s55, %s57
      %p64 = scmp.eq.s32.totalorder %s19, 1
      %p65 = por %p63, %p64
      %p66 = scmp.ne.s32.totalorder %s57, %s58
      %p67 = scmp.eq.s32.totalorder %s19, 0
      %p68 = por %p66, %p67
      %p69 = scmp.ne.s32.totalorder %s57, %s58
      %p70 = scmp.eq.s32.totalorder %s20, 1
      %p71 = por %p69, %p70
      %p73 = scmp.ne.s32.totalorder %s58, %s72
      %p74 = scmp.eq.s32.totalorder %s20, 0
      %p75 = por %p73, %p74
      %s77 = sadd.s32 %s76, 1
      %p80 = scmp.eq.s32.totalorder %s14, 1
      %p81 = scmp.ne.s32.totalorder %s76, %s78
      %p82 = scmp.eq.s32.totalorder %s14, 0
      %p83 = por %p81, %p82
      %p84 = scmp.ne.s32.totalorder %s76, %s78
      %p85 = scmp.eq.s32.totalorder %s19, 1
      %p86 = por %p84, %p85
      %p87 = scmp.ne.s32.totalorder %s78, %s79
      %p88 = scmp.eq.s32.totalorder %s19, 0
      %p89 = por %p87, %p88
      %p90 = scmp.ne.s32.totalorder %s78, %s79
      %p91 = scmp.eq.s32.totalorder %s20, 1
      %p92 = por %p90, %p91
      %p94 = scmp.ne.s32.totalorder %s79, %s93
      %p95 = scmp.eq.s32.totalorder %s20, 0
      %p96 = por %p94, %p95
      %s98 = sadd.s32 %s97, 1
      %p101 = scmp.eq.s32.totalorder %s14, 1
      %p102 = scmp.ne.s32.totalorder %s97, %s99
      %p103 = scmp.eq.s32.totalorder %s14, 0
      %p104 = por %p102, %p103
      %p105 = scmp.ne.s32.totalorder %s97, %s99
      %p106 = scmp.eq.s32.totalorder %s19, 1
      %p107 = por %p105, %p106
      %p108 = scmp.ne.s32.totalorder %s99, %s100
      %p109 = scmp.eq.s32.totalorder %s19, 0
      %p110 = por %p108, %p109
      %p111 = scmp.ne.s32.totalorder %s99, %s100
      %p112 = scmp.eq.s32.totalorder %s20, 1
      %p113 = por %p111, %p112
      %p115 = scmp.ne.s32.totalorder %s100, %s114
      %p116 = scmp.eq.s32.totalorder %s20, 0
      %p117 = por %p115, %p116
      %s118 = ssub.s32 %s21, %s33
      %s119 = ssub.s32 %s22, %s29
      %s120 = sor.u32 %s118, %s119
      %p121 = scmp.eq.s32.totalorder %s120, 0
      %s123 = sadd.s32 %s122, 1
      %s124 = scalar_select %p121, %s122, %s123
      %p127 = pneg %p121
      %p128 = scmp.eq.s32.totalorder %s14, 1
      %p129 = por %p127, %p128
      %p130 = scmp.ne.s32.totalorder %s122, %s125
      %p131 = scmp.eq.s32.totalorder %s14, 0
      %p132 = por %p130, %p131
      %p133 = scmp.ne.s32.totalorder %s122, %s125
      %p134 = scmp.eq.s32.totalorder %s19, 1
      %p135 = por %p133, %p134
      %p136 = scmp.ne.s32.totalorder %s125, %s126
      %p137 = scmp.eq.s32.totalorder %s19, 0
      %p138 = por %p136, %p137
      %p139 = scmp.ne.s32.totalorder %s125, %s126
      %p140 = scmp.eq.s32.totalorder %s20, 1
      %p141 = por %p139, %p140
      %p143 = scmp.ne.s32.totalorder %s126, %s142
      %p144 = scmp.eq.s32.totalorder %s20, 0
      %p145 = por %p143, %p144
      %s146 = ssub.s32 %s21, %s33
      %s147 = ssub.s32 %s22, %s29
      %s148 = sor.u32 %s146, %s147
      %p149 = scmp.eq.s32.totalorder %s148, 0
      %s151 = sadd.s32 %s150, 1
      %s152 = scalar_select %p149, %s150, %s151
      %p155 = pneg %p149
      %p156 = scmp.eq.s32.totalorder %s14, 1
      %p157 = por %p155, %p156
      %p158 = scmp.ne.s32.totalorder %s150, %s153
      %p159 = scmp.eq.s32.totalorder %s14, 0
      %p160 = por %p158, %p159
      %p161 = scmp.ne.s32.totalorder %s150, %s153
      %p162 = scmp.eq.s32.totalorder %s19, 1
      %p163 = por %p161, %p162
      %p164 = scmp.ne.s32.totalorder %s153, %s154
      %p165 = scmp.eq.s32.totalorder %s19, 0
      %p166 = por %p164, %p165
      %p167 = scmp.ne.s32.totalorder %s153, %s154
      %p168 = scmp.eq.s32.totalorder %s20, 1
      %p169 = por %p167, %p168
      %p171 = scmp.ne.s32.totalorder %s154, %s170
      %p172 = scmp.eq.s32.totalorder %s20, 0
      %p173 = por %p171, %p172
      %p174 = scmp.le.s32.totalorder 1, %s14
      %p175 = scmp.lt.s32.totalorder %s14, 3
      %p176 = pnand %p174, %p175
      %p177 = pneg %p176
      // Predicated region
      $region9: #{pixel_attention.1} parent=5 // pred_check
        _
      $region10: #{pixel_attention.1} parent=5 // pred_check_branch
        %179 = sbr.rel (%p176) target = $region12
      $region11: #{pixel_attention.1} parent=5 // pred_region
        %s180 = ssub.s32 %s14, 1
        // Predicated region
        $region13: #{pixel_attention.1} parent=11 // pred_check
          %p181 = pneg %p47
        $region14: #{pixel_attention.1} parent=11 // pred_check_branch
          %183 = sbr.rel (%p181) target = $region16
        $region15: #{pixel_attention.1} parent=11 // pred_region
          %s185 = ssub.s32 16, 16
          %186 = vsyncadd [#allocation4], %s185
          %s188 = sshll.u32 %s0, 4
          %s189 = int_to_ptr.vmem [resolvable:$true] %s188
          %191 = dma.vmem_to_smem %s189, 16, [#allocation3], [#allocation4]
        $region16: #{pixel_attention.1} parent=11 // pred_fallthru
          _
        // Predicated region
        $region17: #{pixel_attention.1} parent=11 // pred_check
          %p192 = pneg %p68
        $region18: #{pixel_attention.1} parent=11 // pred_check_branch
          %194 = sbr.rel (%p192) target = $region20
        $region19: #{pixel_attention.1} parent=11 // pred_region
          %s196 = ssub.s32 16, 16
          %197 = vsyncadd [#allocation6], %s196
          %s199 = sshll.u32 %s1, 4
          %s200 = int_to_ptr.vmem [resolvable:$true] %s199
          %202 = dma.vmem_to_smem %s200, 16, [#allocation5], [#allocation6]
        $region20: #{pixel_attention.1} parent=11 // pred_fallthru
          _
        // Predicated region
        $region21: #{pixel_attention.1} parent=11 // pred_check
          %p203 = pneg %p89
        $region22: #{pixel_attention.1} parent=11 // pred_check_branch
          %205 = sbr.rel (%p203) target = $region24
        $region23: #{pixel_attention.1} parent=11 // pred_region
          %s207 = ssub.s32 16, 16
          %208 = vsyncadd [#allocation6], %s207
          %s210 = sshll.u32 %s2, 4
          %s211 = int_to_ptr.vmem [resolvable:$true] %s210
          %213 = dma.vmem_to_smem %s211, 16, [#allocation7], [#allocation6]
        $region24: #{pixel_attention.1} parent=11 // pred_fallthru
          _
        // Predicated region
        $region25: #{pixel_attention.1} parent=11 // pred_check
          %p214 = pneg %p110
        $region26: #{pixel_attention.1} parent=11 // pred_check_branch
          %216 = sbr.rel (%p214) target = $region28
        $region27: #{pixel_attention.1} parent=11 // pred_region
          _
        $region28: #{pixel_attention.1} parent=11 // pred_fallthru
          _
      $region12: #{pixel_attention.1} parent=5 // pred_fallthru
        _
      %p217 = scmp.lt.s32.totalorder %s14, 2
      // Predicated region
      $region29: #{pixel_attention.1} parent=5 // pred_check
        %p218 = pneg %p217
      $region30: #{pixel_attention.1} parent=5 // pred_check_branch
        %220 = sbr.rel (%p218) target = $region32
      $region31: #{pixel_attention.1} parent=5 // pred_region
        // Predicated region
        $region33: #{pixel_attention.1} parent=31 // pred_check
          %p221 = pneg %p132
        $region34: #{pixel_attention.1} parent=31 // pred_check_branch
          %223 = sbr.rel (%p221) target = $region36
        $region35: #{pixel_attention.1} parent=31 // pred_region
          %p224 = scmp.lt.s32.totalorder %s21, 1
          %s225 = scalar_select %p224, %s21, 1
          %p226 = scmp.lt.s32.totalorder %s22, 0
          %s227 = scalar_select %p226, %s22, 0
          %s228 = smul.addr %s225, 4
          %s229 = sadd.s32 %s227, %s228
          %s230 = smul.addr %s229, 2
          %s231 = scalar_lea.vmem %s4, %s230
        $region36: #{pixel_attention.1} parent=31 // pred_fallthru
          _
      $region32: #{pixel_attention.1} parent=5 // pred_fallthru
        _
      %p232 = scmp.le.s32.totalorder 1, %s14
      %p233 = scmp.lt.s32.totalorder %s14, 3
      %p234 = pnand %p232, %p233
      %p235 = pneg %p234
      // Predicated region
      $region37: #{pixel_attention.1} parent=5 // pred_check
        _
      $region38: #{pixel_attention.1} parent=5 // pred_check_branch
        %237 = sbr.rel (%p234) target = $region40
      $region39: #{pixel_attention.1} parent=5 // pred_region
        %s238 = ssub.s32 %s14, 1
        // Predicated region
        $region41: #{pixel_attention.1} parent=39 // pred_check
          %p239 = pneg %p47
        $region42: #{pixel_attention.1} parent=39 // pred_check_branch
          %241 = sbr.rel (%p239) target = $region44
        $region43: #{pixel_attention.1} parent=39 // pred_region
          %242 = dma.done [#allocation4], 16
        $region44: #{pixel_attention.1} parent=39 // pred_fallthru
          _
        // Predicated region
        $region45: #{pixel_attention.1} parent=39 // pred_check
          %p243 = pneg %p68
        $region46: #{pixel_attention.1} parent=39 // pred_check_branch
          %245 = sbr.rel (%p243) target = $region48
        $region47: #{pixel_attention.1} parent=39 // pred_region
          %246 = dma.done [#allocation6], 16
        $region48: #{pixel_attention.1} parent=39 // pred_fallthru
          _
        // Predicated region
        $region49: #{pixel_attention.1} parent=39 // pred_check
          %p247 = pneg %p89
        $region50: #{pixel_attention.1} parent=39 // pred_check_branch
          %249 = sbr.rel (%p247) target = $region52
        $region51: #{pixel_attention.1} parent=39 // pred_region
          %250 = dma.done [#allocation6], 16
        $region52: #{pixel_attention.1} parent=39 // pred_fallthru
          _
        %251 = sfence
        %p252 = pneg %p47
        %p253 = pneg %p44
        %p254 = pneg %p68
        %p255 = pneg %p65
        %p256 = pneg %p89
        %p257 = pneg %p86
        %p258 = pneg %p110
        %p259 = pneg %p107
        %p260 = scmp.lt.s32.totalorder %s23, 1
        %s261 = scalar_select %p260, %s23, 1
        %p262 = scmp.lt.s32.totalorder %s24, 0
        %s263 = scalar_select %p262, %s24, 0
        %s264 = smul.addr %s261, 4
        %s265 = sadd.s32 %s263, %s264
        %s266 = smul.addr %s265, 2
        %s267 = scalar_lea.vmem %s4, %s266
        %p268 = pneg %p138
        %p269 = pneg %p135
        %p270 = pneg %p166
        %p271 = pneg %p163
        %p272 = scmp.lt.s32.totalorder %s23, 1
        %s273 = scalar_select %p272, %s23, 1
        %p274 = scmp.lt.s32.totalorder %s24, 0
        %s275 = scalar_select %p274, %s24, 0
        %s276 = smul.addr %s273, 4
        %s277 = sadd.s32 %s275, %s276
        %s278 = smul.addr %s277, 2
        %s279 = scalar_lea.vmem %s5, %s278
        %p280 = scmp.lt.s32.totalorder %s23, 1
        %s281 = scalar_select %p280, %s23, 1
        %p282 = scmp.lt.s32.totalorder %s24, 0
        %s283 = scalar_select %p282, %s24, 0
        %s284 = smul.addr %s281, 4
        %s285 = sadd.s32 %s283, %s284
        %s286 = smul.addr %s285, 2
        %s287 = scalar_lea.vmem %s4, %s286
        %p288 = scmp.lt.s32.totalorder %s23, 1
        %s289 = scalar_select %p288, %s23, 1
        %p290 = scmp.lt.s32.totalorder %s24, 0
        %s291 = scalar_select %p290, %s24, 0
        %s292 = smul.addr %s289, 4
        %s293 = sadd.s32 %s291, %s292
        %s294 = smul.addr %s293, 2
        %s295 = scalar_lea.vmem %s5, %s294
        %v296 = vld [vmem:[%s287] sm:$0x3]
        %v297 = vld [vmem:[%s287 + $0x2] sm:$0x3]
        %v298 = vld [vmem:[%s287 + $0x4] sm:$0x3]
        %v299 = vld [vmem:[%s287 + $0x6] sm:$0x3]
        %s300 = sld [smem:[#allocation3]]
        %v301 = vstv %s300
        %v302 = vmul.f32 %v296, %v301
        %s303 = sld [smem:[#allocation5]]
        %v304 = vstv %s303
        %v305 = vadd.f32 %v302, %v304
        %s306 = sld [smem:[#allocation3 + $0x1]]
        %v307 = vstv %s306
        %v308 = vmul.f32 %v297, %v307
        %v309 = vadd.f32 %v305, %v308
        %s310 = sld [smem:[#allocation3 + $0x2]]
        %v311 = vstv %s310
        %v312 = vmul.f32 %v298, %v311
        %v313 = vadd.f32 %v309, %v312
        %s314 = sld [smem:[#allocation3 + $0x3]]
        %v315 = vstv %s314
        %v316 = vmul.f32 %v299, %v315
        %v317 = vadd.f32 %v313, %v316
        %v318 = vmax.f32 %v317, 0.0
        %s319 = sld [smem:[#allocation7]]
        %v320 = vstv %s319
        %v321 = vmul.f32 %v318, %v320
        %s322 = sld [smem:[#allocation3 + $0x4]]
        %v323 = vstv %s322
        %v324 = vmul.f32 %v296, %v323
        %s325 = sld [smem:[#allocation5 + $0x1]]
        %v326 = vstv %s325
        %v327 = vadd.f32 %v324, %v326
        %s328 = sld [smem:[#allocation3 + $0x5]]
        %v329 = vstv %s328
        %v330 = vmul.f32 %v297, %v329
        %v331 = vadd.f32 %v327, %v330
        %s332 = sld [smem:[#allocation3 + $0x6]]
        %v333 = vstv %s332
        %v334 = vmul.f32 %v298, %v333
        %v335 = vadd.f32 %v331, %v334
        %s336 = sld [smem:[#allocation3 + $0x7]]
        %v337 = vstv %s336
        %v338 = vmul.f32 %v299, %v337
        %v339 = vadd.f32 %v335, %v338
        %v340 = vmax.f32 %v339, 0.0
        %s341 = sld [smem:[#allocation7 + $0x1]]
        %v342 = vstv %s341
        %v343 = vmul.f32 %v340, %v342
        %v344 = vadd.f32 %v321, %v343
        %s345 = sld [smem:[#allocation2]]
        %v346 = vstv %s345
        %v347 = vadd.f32 %v344, %v346
        %v348 = vxor.u32 %v347, 2147483648
        %v349 = vmul.f32 %v348, 1.442695
        %v350 = vpow.pop %v349
        %v351 = vadd.f32 %v350, 1.0
        %v352 = vrcp.pop %v351
        %v353 = vmul.f32 1.0, %v352
        %v354 = vmul.f32 %v296, %v353
        %v355 = vmul.f32 %v297, %v353
        %v356 = vmul.f32 %v298, %v353
        %v357 = vmul.f32 %v299, %v353
        %358 = vst [vmem:[%s295] sm:$0x3] %v354
        %359 = vst [vmem:[%s295 + $0x2] sm:$0x3] %v355
        %360 = vst [vmem:[%s295 + $0x4] sm:$0x3] %v356
        %361 = vst [vmem:[%s295 + $0x6] sm:$0x3] %v357
        %p362 = scmp.lt.s32.totalorder %s23, 1
        %s363 = scalar_select %p362, %s23, 1
        %p364 = scmp.lt.s32.totalorder %s24, 0
        %s365 = scalar_select %p364, %s24, 0
        %s366 = smul.addr %s363, 4
        %s367 = sadd.s32 %s365, %s366
        %s368 = smul.addr %s367, 2
        %s369 = scalar_lea.vmem %s5, %s368
        // Predicated region
        $region53: #{pixel_attention.1} parent=39 // pred_check
          %p370 = pneg %p163
        $region54: #{pixel_attention.1} parent=39 // pred_check_branch
          %372 = sbr.rel (%p370) target = $region56
        $region55: #{pixel_attention.1} parent=39 // pred_region
          _
        $region56: #{pixel_attention.1} parent=39 // pred_fallthru
          _
      $region40: #{pixel_attention.1} parent=5 // pred_fallthru
        _
      %p373 = scmp.le.s32.totalorder 2, %s14
      // Predicated region
      $region57: #{pixel_attention.1} parent=5 // pred_check
        %p374 = pneg %p373
      $region58: #{pixel_attention.1} parent=5 // pred_check_branch
        %376 = sbr.rel (%p374) target = $region60
      $region59: #{pixel_attention.1} parent=5 // pred_region
        %s377 = ssub.s32 %s14, 2
        // Predicated region
        $region61: #{pixel_attention.1} parent=59 // pred_check
          %p378 = pneg %p169
        $region62: #{pixel_attention.1} parent=59 // pred_check_branch
          %380 = sbr.rel (%p378) target = $region64
        $region63: #{pixel_attention.1} parent=59 // pred_region
          %p381 = scmp.lt.s32.totalorder %s25, 1
          %s382 = scalar_select %p381, %s25, 1
          %p383 = scmp.lt.s32.totalorder %s26, 0
          %s384 = scalar_select %p383, %s26, 0
          %s385 = smul.addr %s382, 4
          %s386 = sadd.s32 %s384, %s385
          %s387 = smul.addr %s386, 2
          %s388 = scalar_lea.vmem %s5, %s387
        $region64: #{pixel_attention.1} parent=59 // pred_fallthru
          _
      $region60: #{pixel_attention.1} parent=5 // pred_fallthru
        _
    $region6: #{pixel_attention.1} parent=1 // loop_footer
      %s18 = sadd.s32 1, %s14
    $region7: #{pixel_attention.1} parent=1 // loop_footer_branch
      %13 = sbr.rel target = $region3
    $region8: #{pixel_attention.1} parent=1 // loop_exit
      _
    %389 = vsyncpa [#allocation4], 1
    %s390 = scalar_lea.sflag [#allocation4], 1
    %391 = vsyncpa %s390, 1
    %392 = vsyncpa [#allocation6], 1

</llo_original>
